<compile_context>
chip_gen: v6e
topology: v6e:2x2x1
jax: 0.10.0
libtpu: 0.0.40
codegen_flags: <defaults>
</compile_context>

<pallas_src>
import jax
import jax.numpy as jnp
from jax.experimental import pallas as pl
from jax.experimental.pallas import tpu as pltpu


def _round_up(x, m):
    return (x + m - 1) // m * m


def _cdiv(a, b):
    return (a + b - 1) // b


def _future_residual_kernel(enc_ref, x_ref, w1_ref, c1_ref, w2_ref, c2_ref, out_ref):
    # fc1 with folded bn1 (+ bias), then relu.  Matmul operands follow the
    # weight dtype (bf16 when bf16 params are supplied); accumulate in f32.
    x = x_ref[...].astype(w1_ref.dtype)
    h = jnp.dot(x, w1_ref[...], preferred_element_type=jnp.float32) + c1_ref[...]
    h = jnp.maximum(h, 0.0)
    # fc2 with folded bn2 (+ bias)
    y = jnp.dot(h.astype(w2_ref.dtype), w2_ref[...],
                preferred_element_type=jnp.float32) + c2_ref[...]
    # Fused concat + final relu: two static column-slice stores into the single
    # lane-dense (tm, E+D) output tile.  With E = D = 64 the HBM-side tile is
    # 128 lanes wide (unmasked writeback); the half-width VMEM stores are not
    # the bottleneck for this HBM-bound kernel.
    E = enc_ref.shape[-1]
    out_ref[:, :E] = jnp.maximum(enc_ref[...], 0.0).astype(out_ref.dtype)
    out_ref[:, E:] = jnp.maximum(y, 0.0).astype(out_ref.dtype)


def future_residual(enc_out, dec_inp, params, *, tm=4096, out_dtype=None):
    """enc_out: (B, T, E), dec_inp: (B, T, D) -> (B, T, E + D)."""
    B, T, E = enc_out.shape
    Bd, Td, D = dec_inp.shape
    assert (Bd, Td) == (B, T)
    M = B * T
    if out_dtype is None:
        out_dtype = enc_out.dtype
    out_dtype = jnp.dtype(out_dtype)

    w1f, c1, w2f, c2 = params  # folded: W1' (D,D), c1 (1,D) f32, W2' (D,D), c2 (1,D) f32

    # ---- row tiling --------------------------------------------------------
    M8 = _round_up(M, 8)
    tm = max(8, min(_round_up(tm, 8), M8))
    n_steps = _cdiv(M8, tm)
    # v7x has 2 TensorCores; the single "parallel" grid axis is what Mosaic
    # shards across them, so ensure >= 2 steps whenever the problem allows.
    if n_steps < 2 and M8 >= 16:
        n_steps = 2
    tm = _round_up(_cdiv(M8, n_steps), 8)
    grid_m = _cdiv(M, tm)  # ragged last tile handled by Pallas: no pad, no slice

    enc2d = enc_out.reshape(M, E)
    x2d = dec_inp.reshape(M, D)

    # ---- VMEM budget & scheduler hint --------------------------------------
    enc_b = enc2d.dtype.itemsize
    x_b = x2d.dtype.itemsize
    o_b = out_dtype.itemsize
    w_b = w1f.dtype.itemsize
    step_bytes = 2 * tm * (E * enc_b + D * x_b + (E + D) * o_b)  # double-buffered I/O tiles
    const_bytes = 4 * (D * D * w_b + D * 4)                      # weights + f32 biases (buffered)
    vmem_limit = int(min(max(step_bytes + const_bytes + (2 << 20), 16 << 20), 64 << 20))

    io_bytes = M * (E * enc_b + D * x_b + (E + D) * o_b) + 2 * D * D * w_b + 2 * D * 4
    cost = pl.CostEstimate(flops=4 * M * D * D, transcendentals=0,
                           bytes_accessed=int(io_bytes))

    row_map = lambda i: (i, 0)
    full_map = lambda i: (0, 0)

    out = pl.pallas_call(
        _future_residual_kernel,
        out_shape=jax.ShapeDtypeStruct((M, E + D), out_dtype),
        grid_spec=pltpu.PrefetchScalarGridSpec(
            num_scalar_prefetch=0,
            grid=(grid_m,),
            in_specs=[
                pl.BlockSpec((tm, E), row_map),   # enc_out rows
                pl.BlockSpec((tm, D), row_map),   # dec_inp rows
                pl.BlockSpec((D, D), full_map),   # W1' = W1^T * s1 (grid-resident)
                pl.BlockSpec((1, D), full_map),   # c1  = b1*s1 + t1
                pl.BlockSpec((D, D), full_map),   # W2' = W2^T * s2
                pl.BlockSpec((1, D), full_map),   # c2  = b2*s2 + t2
            ],
            out_specs=pl.BlockSpec((tm, E + D), row_map),  # fused concat output
        ),
        compiler_params=pltpu.CompilerParams(
            dimension_semantics=("parallel",),
            vmem_limit_bytes=vmem_limit,
        ),
        cost_estimate=cost,
    )(enc2d, x2d, w1f, c1, w2f, c2)

    return out.reshape(B, T, E + D)


def make_raw_params(key, D, eps=1e-5):
    """Deterministic synthetic Linear + eval-mode BatchNorm1d parameters, with
    each BN already reduced to a per-channel scale/shift (s, t)."""
    ks = jax.random.split(key, 8)
    w1 = jax.random.normal(ks[0], (D, D), jnp.float32) * 0.1   # torch Linear layout (out, in)
    b1 = jax.random.normal(ks[1], (D,), jnp.float32) * 0.1
    w2 = jax.random.normal(ks[2], (D, D), jnp.float32) * 0.1
    b2 = jax.random.normal(ks[3], (D,), jnp.float32) * 0.1
    g1 = 1.0 + 0.1 * jax.random.normal(ks[4], (D,), jnp.float32)
    be1 = 0.1 * jax.random.normal(ks[5], (D,), jnp.float32)
    rm1 = 0.1 * jax.random.normal(ks[6], (D,), jnp.float32)
    rv1 = 1.0 + 0.1 * jnp.abs(jax.random.normal(ks[7], (D,), jnp.float32))
    g2 = 1.0 - 0.05 * jnp.arange(D, dtype=jnp.float32) / D
    be2 = 0.02 * jnp.arange(D, dtype=jnp.float32) / D
    rm2 = -0.03 * jnp.ones((D,), jnp.float32)
    rv2 = 1.2 * jnp.ones((D,), jnp.float32)
    s1 = g1 / jnp.sqrt(rv1 + eps)
    t1 = be1 - rm1 * s1
    s2 = g2 / jnp.sqrt(rv2 + eps)
    t2 = be2 - rm2 * s2
    # TODO(synk): training-mode BatchNorm (batch statistics) is not folded; this
    # covers the eval-mode forward pass only.
    return (w1, b1, w2, b2, s1, t1, s2, t2)


def fold_params(raw, weight_dtype=jnp.float32):
    """Fold BN scale/shift + Linear bias into the weights:
    x @ W^T * s + (b*s + t)  ==  x @ (W^T * s) + c.
    Weights may be cast (e.g. bf16) to halve their footprint; the folded
    biases stay f32 (they are added to the f32 accumulator)."""
    w1, b1, w2, b2, s1, t1, s2, t2 = raw
    D = w1.shape[0]
    w1f = (w1.T * s1[None, :]).astype(weight_dtype)
    c1 = (b1 * s1 + t1).reshape(1, D).astype(jnp.float32)
    w2f = (w2.T * s2[None, :]).astype(weight_dtype)
    c2 = (b2 * s2 + t2).reshape(1, D).astype(jnp.float32)
    return (w1f, c1, w2f, c2)


def reference(enc_out, dec_inp, raw):
    w1, b1, w2, b2, s1, t1, s2, t2 = raw
    h = dec_inp @ w1.T + b1
    h = jnp.maximum(h * s1 + t1, 0.0)
    y = (h @ w2.T + b2) * s2 + t2
    return jnp.maximum(jnp.concatenate([enc_out, y], axis=-1), 0.0)


if __name__ == "__main__":
    B, T, D = 2, 8, 64   # xDim = 64 (module default); enc_out feature dim also 64
    key = jax.random.PRNGKey(0)
    k_enc, k_dec, k_par = jax.random.split(key, 3)
    enc_out = jax.random.normal(k_enc, (B, T, D), jnp.float32)
    dec_inp = jax.random.normal(k_dec, (B, T, D), jnp.float32)
    raw = make_raw_params(k_par, D)
    ref = reference(enc_out, dec_inp, raw)

    # f32 path: matches the reference tightly.
    out = future_residual(enc_out, dec_inp, fold_params(raw, jnp.float32))
    out = jax.block_until_ready(out)
    assert out.shape == (B, T, 2 * D), out.shape
    assert jnp.allclose(out, ref, rtol=1e-4, atol=1e-4), "f32 mismatch vs reference"

    # bf16 I/O path: halves the streamed HBM bytes of this bandwidth-bound
    # kernel (biggest win on v5e); f32 accumulation, so only I/O-rounding error.
    out_bf = future_residual(
        enc_out.astype(jnp.bfloat16), dec_inp.astype(jnp.bfloat16),
        fold_params(raw, jnp.bfloat16))
    out_bf = jax.block_until_ready(out_bf)
    assert out_bf.dtype == jnp.bfloat16
    assert jnp.allclose(out_bf.astype(jnp.float32), ref, rtol=5e-2, atol=5e-2), \
        "bf16 mismatch vs reference"

    print("KERNEL_OK")
</pallas_src>

<mosaic_0001>
module attributes {stable_mosaic.version = 11 : i64} {
  func.func @_future_residual_kernel(%arg0: i32, %arg1: memref<8x64xf32, #tpu.memory_space<vmem>>, %arg2: memref<8x64xf32, #tpu.memory_space<vmem>>, %arg3: memref<64x64xf32, #tpu.memory_space<vmem>>, %arg4: memref<1x64xf32, #tpu.memory_space<vmem>>, %arg5: memref<64x64xf32, #tpu.memory_space<vmem>>, %arg6: memref<1x64xf32, #tpu.memory_space<vmem>>, %arg7: memref<8x128xf32, #tpu.memory_space<vmem>>) attributes {dimension_semantics = [#tpu.dimension_semantics<parallel>], iteration_bounds = array<i64: 2>, scalar_prefetch = 0 : i64, scratch_operands = 0 : i64, tpu.core_type = #tpu.core_type<tc>, window_params = [{transform_indices = @transform_0, window_bounds = array<i64: 8, 64>}, {transform_indices = @transform_1, window_bounds = array<i64: 8, 64>}, {pipeline_mode = #tpu.pipeline_mode<synchronous>, transform_indices = @transform_2, window_bounds = array<i64: 64, 64>}, {pipeline_mode = #tpu.pipeline_mode<synchronous>, transform_indices = @transform_3, window_bounds = array<i64: 1, 64>}, {pipeline_mode = #tpu.pipeline_mode<synchronous>, transform_indices = @transform_4, window_bounds = array<i64: 64, 64>}, {pipeline_mode = #tpu.pipeline_mode<synchronous>, transform_indices = @transform_5, window_bounds = array<i64: 1, 64>}, {transform_indices = @transform_6, window_bounds = array<i64: 8, 128>}]} {
    %c0 = arith.constant 0 : index
    %c0_0 = arith.constant 0 : index
    %0 = vector.load %arg2[%c0, %c0_0] : memref<8x64xf32, #tpu.memory_space<vmem>>, vector<8x64xf32>
    %c0_1 = arith.constant 0 : index
    %c0_2 = arith.constant 0 : index
    %1 = vector.load %arg3[%c0_1, %c0_2] : memref<64x64xf32, #tpu.memory_space<vmem>>, vector<64x64xf32>
    %cst = arith.constant dense<0.000000e+00> : vector<8x64xf32>
    %2 = tpu.matmul %0, %1, %cst {dimension_numbers = #tpu.dot_dimension_numbers<[1], [0], [0], [1], [0, 0, 1, 1], [], []>} : vector<8x64xf32>, vector<64x64xf32>, vector<8x64xf32> -> vector<8x64xf32>
    %c0_3 = arith.constant 0 : index
    %c0_4 = arith.constant 0 : index
    %3 = vector.load %arg4[%c0_3, %c0_4] : memref<1x64xf32, #tpu.memory_space<vmem>>, vector<1x64xf32>
    %4 = vector.broadcast %3 : vector<1x64xf32> to vector<8x64xf32>
    %5 = arith.addf %2, %4 : vector<8x64xf32>
    %cst_5 = arith.constant 0.000000e+00 : f32
    %6 = vector.broadcast %cst_5 : f32 to vector<8x64xf32>
    %7 = arith.maximumf %5, %6 : vector<8x64xf32>
    %c0_6 = arith.constant 0 : index
    %c0_7 = arith.constant 0 : index
    %8 = vector.load %arg5[%c0_6, %c0_7] : memref<64x64xf32, #tpu.memory_space<vmem>>, vector<64x64xf32>
    %cst_8 = arith.constant dense<0.000000e+00> : vector<8x64xf32>
    %9 = tpu.matmul %7, %8, %cst_8 {dimension_numbers = #tpu.dot_dimension_numbers<[1], [0], [0], [1], [0, 0, 1, 1], [], []>} : vector<8x64xf32>, vector<64x64xf32>, vector<8x64xf32> -> vector<8x64xf32>
    %c0_9 = arith.constant 0 : index
    %c0_10 = arith.constant 0 : index
    %10 = vector.load %arg6[%c0_9, %c0_10] : memref<1x64xf32, #tpu.memory_space<vmem>>, vector<1x64xf32>
    %11 = vector.broadcast %10 : vector<1x64xf32> to vector<8x64xf32>
    %12 = arith.addf %9, %11 : vector<8x64xf32>
    %c0_11 = arith.constant 0 : index
    %c0_12 = arith.constant 0 : index
    %13 = vector.load %arg1[%c0_11, %c0_12] : memref<8x64xf32, #tpu.memory_space<vmem>>, vector<8x64xf32>
    %cst_13 = arith.constant 0.000000e+00 : f32
    %14 = vector.broadcast %cst_13 : f32 to vector<8x64xf32>
    %15 = arith.maximumf %13, %14 : vector<8x64xf32>
    %c0_14 = arith.constant 0 : index
    %c0_15 = arith.constant 0 : index
    %16 = vector.load %arg7[%c0_14, %c0_15] : memref<8x128xf32, #tpu.memory_space<vmem>>, vector<8x64xf32>
    tpu.vector_store %arg7[%c0_14, %c0_15], %15 {strides = array<i32>} : memref<8x128xf32, #tpu.memory_space<vmem>>, vector<8x64xf32>,
    %cst_16 = arith.constant 0.000000e+00 : f32
    %17 = vector.broadcast %cst_16 : f32 to vector<8x64xf32>
    %18 = arith.maximumf %12, %17 : vector<8x64xf32>
    %c0_17 = arith.constant 0 : index
    %c64 = arith.constant 64 : index
    %19 = vector.load %arg7[%c0_17, %c64] : memref<8x128xf32, #tpu.memory_space<vmem>>, vector<8x64xf32>
    tpu.vector_store %arg7[%c0_17, %c64], %18 {strides = array<i32>} : memref<8x128xf32, #tpu.memory_space<vmem>>, vector<8x64xf32>,
    return
  }
  func.func @transform_0(%arg0: i32) -> (i32, i32) {
    %c0_i32 = arith.constant 0 : i32
    %c0_i32_0 = arith.constant 0 : i32
    return %arg0, %c0_i32 : i32, i32
  }
  func.func @transform_1(%arg0: i32) -> (i32, i32) {
    %c0_i32 = arith.constant 0 : i32
    %c0_i32_0 = arith.constant 0 : i32
    return %arg0, %c0_i32 : i32, i32
  }
  func.func @transform_2(%arg0: i32) -> (i32, i32) {
    %c0_i32 = arith.constant 0 : i32
    %c0_i32_0 = arith.constant 0 : i32
    %c0_i32_1 = arith.constant 0 : i32
    return %c0_i32, %c0_i32_0 : i32, i32
  }
  func.func @transform_3(%arg0: i32) -> (i32, i32) {
    %c0_i32 = arith.constant 0 : i32
    %c0_i32_0 = arith.constant 0 : i32
    %c0_i32_1 = arith.constant 0 : i32
    return %c0_i32, %c0_i32_0 : i32, i32
  }
  func.func @transform_4(%arg0: i32) -> (i32, i32) {
    %c0_i32 = arith.constant 0 : i32
    %c0_i32_0 = arith.constant 0 : i32
    %c0_i32_1 = arith.constant 0 : i32
    return %c0_i32, %c0_i32_0 : i32, i32
  }
  func.func @transform_5(%arg0: i32) -> (i32, i32) {
    %c0_i32 = arith.constant 0 : i32
    %c0_i32_0 = arith.constant 0 : i32
    %c0_i32_1 = arith.constant 0 : i32
    return %c0_i32, %c0_i32_0 : i32, i32
  }
  func.func @transform_6(%arg0: i32) -> (i32, i32) {
    %c0_i32 = arith.constant 0 : i32
    %c0_i32_0 = arith.constant 0 : i32
    return %arg0, %c0_i32 : i32, i32
  }
}

</mosaic_0001>

<llo_original>
// kernel: tpu_custom_call.1
$region0: #{tpu_custom_call.1}
  #allocation0 [shape = 'u32[]', space=smem, size = 0x4, offset = 0x4, fixed_abs, tag = 'smem constant byte address 0x4 - core index']
  #allocation1 [shape = 'u32[144,128]{1,0:T(1,128)}', space=vmem, size = 0x12000, scoped, tag = 'internal scratch']
  %s0 = inlined_call_operand.hbm [shape: f32[16,64], index: 0, kind: input, shape index: {}]
  %s1 = inlined_call_operand.hbm [shape: f32[16,64], index: 1, kind: input, shape index: {}]
  %s2 = inlined_call_operand.hbm [shape: f32[64,64], index: 2, kind: input, shape index: {}]
  %s3 = inlined_call_operand.vmem [shape: f32[1,64], index: 3, kind: input, shape index: {}]
  %s4 = inlined_call_operand.hbm [shape: f32[64,64], index: 4, kind: input, shape index: {}]
  %s5 = inlined_call_operand.vmem [shape: f32[1,64], index: 5, kind: input, shape index: {}]
  %s6 = inlined_call_operand.hbm [shape: f32[16,128], index: 6, kind: output, shape index: {}]
  %s7 = sld [smem:[#allocation0]]
  $region73: #{tpu_custom_call.1} parent=0
    _
  %s9 = ssub.s32 1, %s7
  %s10 = scalar_select 0, %s9, %s7
  $region1: #{tpu_custom_call.1} parent=0
    #allocation2 [shape = 'u8[8192]{0}', space=vmem, size = 0x2000, scoped, tag = 'input window, operand 0']
    #allocation3 [shape = 's32[2]{0}', space=sflag, size = 0x8, scoped, tag = 'scoped memory for tpu_custom_call.1']
    #allocation4 [shape = 's32[2]{0}', space=sflag, size = 0x8, scoped, tag = 'scoped memory for tpu_custom_call.1']
    #allocation5 [shape = 'u8[8192]{0}', space=vmem, size = 0x2000, scoped, tag = 'input window, operand 1']
    #allocation6 [shape = 's32[2]{0}', space=sflag, size = 0x8, scoped, tag = 'scoped memory for tpu_custom_call.1']
    #allocation7 [shape = 'u8[32768]{0}', space=vmem, size = 0x8000, scoped, tag = 'input window, operand 2, single buffered']
    #allocation8 [shape = 'u8[32768]{0}', space=vmem, size = 0x8000, scoped, tag = 'input window, operand 4, single buffered']
    #allocation9 [shape = 's32[1]{0}', space=sflag, size = 0x4, scoped, tag = 'scoped memory for tpu_custom_call.1']
    #allocation10 [shape = 'u8[8192]{0}', space=vmem, size = 0x2000, scoped, tag = 'output window, operand 0']
    %11 = vsyncpa [#allocation3], 0
    %s12 = scalar_lea.sflag [#allocation3], 1
    %13 = vsyncpa %s12, 0
    %14 = vsyncpa [#allocation6], 0
    %s15 = scalar_lea.sflag [#allocation6], 1
    %16 = vsyncpa %s15, 0
    %17 = vsyncpa [#allocation9], 0
    %18 = vsyncpa [#allocation4], 0
    %s19 = scalar_lea.sflag [#allocation4], 1
    %20 = vsyncpa %s19, 0
    loop: start=0, step=1, limit=4
    $region2: #{tpu_custom_call.1} parent=1 // loop_pre_header
      _
    $region3: #{tpu_custom_call.1} parent=1 // loop_header
      %s22 = sphi 0, %s26
      %p23 = scmp.ge.s32.totalorder %s22, 4
      %s32 = sphi 0, %s34
      %s35 = sphi 0, %s32
      %s36 = sphi 0, %s35
      %s52 = sphi 0, %s36
      %s58 = sphi 0, %s60
      %s61 = sphi 0, %s58
      %s62 = sphi 0, %s61
      %s78 = sphi 0, %s62
      %s82 = sphi 0, %s82
      %s84 = sphi 0, %s82
      %s85 = sphi 0, %s84
      %s99 = sphi 0, %s85
      %s103 = sphi 0, %s103
      %s105 = sphi 0, %s103
      %s106 = sphi 0, %s105
      %s120 = sphi 0, %s106
      %s124 = sphi 0, %s124
      %s126 = sphi 0, %s124
      %s127 = sphi 0, %s126
      %s141 = sphi 0, %s127
      %s145 = sphi 0, %s145
      %s147 = sphi 0, %s145
      %s148 = sphi 0, %s147
      %s162 = sphi 0, %s148
      %s168 = sphi 0, %s170
      %s171 = sphi 0, %s168
      %s172 = sphi 0, %s171
      %s188 = sphi 0, %s172
    $region4: #{tpu_custom_call.1} parent=1 // loop_header_branch
      %25 = sbr.rel (%p23) target = $region8
    $region5: #{tpu_custom_call.1} parent=1 // loop_body
      %s27 = ssub.s32 %s22, 1
      %s28 = ssub.s32 %s22, 2
      %s29 = sadd.s32 %s22, 1
      %s30 = ssub.s32 %s22, %s29
      %p31 = scmp.eq.s32.totalorder %s30, 0
      %s33 = sadd.s32 %s32, 1
      %s34 = scalar_select %p31, %s32, %s33
      %p37 = pneg %p31
      %p38 = scmp.eq.s32.totalorder %s22, 1
      %p39 = por %p37, %p38
      %p40 = scmp.ne.s32.totalorder %s32, %s35
      %p41 = scmp.eq.s32.totalorder %s22, 0
      %p42 = por %p40, %p41
      %p43 = scmp.ne.s32.totalorder %s32, %s35
      %p44 = scmp.eq.s32.totalorder %s27, 1
      %p45 = por %p43, %p44
      %p46 = scmp.ne.s32.totalorder %s35, %s36
      %p47 = scmp.eq.s32.totalorder %s27, 0
      %p48 = por %p46, %p47
      %p49 = scmp.ne.s32.totalorder %s35, %s36
      %p50 = scmp.eq.s32.totalorder %s28, 1
      %p51 = por %p49, %p50
      %p53 = scmp.ne.s32.totalorder %s36, %s52
      %p54 = scmp.eq.s32.totalorder %s28, 0
      %p55 = por %p53, %p54
      %s56 = ssub.s32 %s22, %s29
      %p57 = scmp.eq.s32.totalorder %s56, 0
      %s59 = sadd.s32 %s58, 1
      %s60 = scalar_select %p57, %s58, %s59
      %p63 = pneg %p57
      %p64 = scmp.eq.s32.totalorder %s22, 1
      %p65 = por %p63, %p64
      %p66 = scmp.ne.s32.totalorder %s58, %s61
      %p67 = scmp.eq.s32.totalorder %s22, 0
      %p68 = por %p66, %p67
      %p69 = scmp.ne.s32.totalorder %s58, %s61
      %p70 = scmp.eq.s32.totalorder %s27, 1
      %p71 = por %p69, %p70
      %p72 = scmp.ne.s32.totalorder %s61, %s62
      %p73 = scmp.eq.s32.totalorder %s27, 0
      %p74 = por %p72, %p73
      %p75 = scmp.ne.s32.totalorder %s61, %s62
      %p76 = scmp.eq.s32.totalorder %s28, 1
      %p77 = por %p75, %p76
      %p79 = scmp.ne.s32.totalorder %s62, %s78
      %p80 = scmp.eq.s32.totalorder %s28, 0
      %p81 = por %p79, %p80
      %s83 = sadd.s32 %s82, 1
      %p86 = scmp.eq.s32.totalorder %s22, 1
      %p87 = scmp.ne.s32.totalorder %s82, %s84
      %p88 = scmp.eq.s32.totalorder %s22, 0
      %p89 = por %p87, %p88
      %p90 = scmp.ne.s32.totalorder %s82, %s84
      %p91 = scmp.eq.s32.totalorder %s27, 1
      %p92 = por %p90, %p91
      %p93 = scmp.ne.s32.totalorder %s84, %s85
      %p94 = scmp.eq.s32.totalorder %s27, 0
      %p95 = por %p93, %p94
      %p96 = scmp.ne.s32.totalorder %s84, %s85
      %p97 = scmp.eq.s32.totalorder %s28, 1
      %p98 = por %p96, %p97
      %p100 = scmp.ne.s32.totalorder %s85, %s99
      %p101 = scmp.eq.s32.totalorder %s28, 0
      %p102 = por %p100, %p101
      %s104 = sadd.s32 %s103, 1
      %p107 = scmp.eq.s32.totalorder %s22, 1
      %p108 = scmp.ne.s32.totalorder %s103, %s105
      %p109 = scmp.eq.s32.totalorder %s22, 0
      %p110 = por %p108, %p109
      %p111 = scmp.ne.s32.totalorder %s103, %s105
      %p112 = scmp.eq.s32.totalorder %s27, 1
      %p113 = por %p111, %p112
      %p114 = scmp.ne.s32.totalorder %s105, %s106
      %p115 = scmp.eq.s32.totalorder %s27, 0
      %p116 = por %p114, %p115
      %p117 = scmp.ne.s32.totalorder %s105, %s106
      %p118 = scmp.eq.s32.totalorder %s28, 1
      %p119 = por %p117, %p118
      %p121 = scmp.ne.s32.totalorder %s106, %s120
      %p122 = scmp.eq.s32.totalorder %s28, 0
      %p123 = por %p121, %p122
      %s125 = sadd.s32 %s124, 1
      %p128 = scmp.eq.s32.totalorder %s22, 1
      %p129 = scmp.ne.s32.totalorder %s124, %s126
      %p130 = scmp.eq.s32.totalorder %s22, 0
      %p131 = por %p129, %p130
      %p132 = scmp.ne.s32.totalorder %s124, %s126
      %p133 = scmp.eq.s32.totalorder %s27, 1
      %p134 = por %p132, %p133
      %p135 = scmp.ne.s32.totalorder %s126, %s127
      %p136 = scmp.eq.s32.totalorder %s27, 0
      %p137 = por %p135, %p136
      %p138 = scmp.ne.s32.totalorder %s126, %s127
      %p139 = scmp.eq.s32.totalorder %s28, 1
      %p140 = por %p138, %p139
      %p142 = scmp.ne.s32.totalorder %s127, %s141
      %p143 = scmp.eq.s32.totalorder %s28, 0
      %p144 = por %p142, %p143
      %s146 = sadd.s32 %s145, 1
      %p149 = scmp.eq.s32.totalorder %s22, 1
      %p150 = scmp.ne.s32.totalorder %s145, %s147
      %p151 = scmp.eq.s32.totalorder %s22, 0
      %p152 = por %p150, %p151
      %p153 = scmp.ne.s32.totalorder %s145, %s147
      %p154 = scmp.eq.s32.totalorder %s27, 1
      %p155 = por %p153, %p154
      %p156 = scmp.ne.s32.totalorder %s147, %s148
      %p157 = scmp.eq.s32.totalorder %s27, 0
      %p158 = por %p156, %p157
      %p159 = scmp.ne.s32.totalorder %s147, %s148
      %p160 = scmp.eq.s32.totalorder %s28, 1
      %p161 = por %p159, %p160
      %p163 = scmp.ne.s32.totalorder %s148, %s162
      %p164 = scmp.eq.s32.totalorder %s28, 0
      %p165 = por %p163, %p164
      %s166 = ssub.s32 %s22, %s29
      %p167 = scmp.eq.s32.totalorder %s166, 0
      %s169 = sadd.s32 %s168, 1
      %s170 = scalar_select %p167, %s168, %s169
      %p173 = pneg %p167
      %p174 = scmp.eq.s32.totalorder %s22, 1
      %p175 = por %p173, %p174
      %p176 = scmp.ne.s32.totalorder %s168, %s171
      %p177 = scmp.eq.s32.totalorder %s22, 0
      %p178 = por %p176, %p177
      %p179 = scmp.ne.s32.totalorder %s168, %s171
      %p180 = scmp.eq.s32.totalorder %s27, 1
      %p181 = por %p179, %p180
      %p182 = scmp.ne.s32.totalorder %s171, %s172
      %p183 = scmp.eq.s32.totalorder %s27, 0
      %p184 = por %p182, %p183
      %p185 = scmp.ne.s32.totalorder %s171, %s172
      %p186 = scmp.eq.s32.totalorder %s28, 1
      %p187 = por %p185, %p186
      %p189 = scmp.ne.s32.totalorder %s172, %s188
      %p190 = scmp.eq.s32.totalorder %s28, 0
      %p191 = por %p189, %p190
      %p192 = scmp.le.s32.totalorder 1, %s22
      %p193 = scmp.lt.s32.totalorder %s22, 3
      %p194 = pnand %p192, %p193
      %p195 = pneg %p194
      // Predicated region
      $region9: #{tpu_custom_call.1} parent=5 // pred_check
        _
      $region10: #{tpu_custom_call.1} parent=5 // pred_check_branch
        %197 = sbr.rel (%p194) target = $region12
      $region11: #{tpu_custom_call.1} parent=5 // pred_region
        %s198 = ssub.s32 %s22, 1
        // Predicated region
        $region13: #{tpu_custom_call.1} parent=11 // pred_check
          %p199 = pneg %p95
        $region14: #{tpu_custom_call.1} parent=11 // pred_check_branch
          %201 = sbr.rel (%p199) target = $region16
        $region15: #{tpu_custom_call.1} parent=11 // pred_region
          %s203 = ssub.s32 1024, 1024
          %204 = vsyncadd [#allocation6], %s203
          %s205 = sshll.u32 [#allocation7], 4
          %s206 = int_to_ptr.vmem [resolvable:$true] %s205
          %211 = dma.hbm_to_vmem [thread:$0]  %s2, 1024, %s206, [#allocation6], 128, 128, 8
        $region16: #{tpu_custom_call.1} parent=11 // pred_fallthru
          _
        // Predicated region
        $region17: #{tpu_custom_call.1} parent=11 // pred_check
          %p212 = pneg %p116
        $region18: #{tpu_custom_call.1} parent=11 // pred_check_branch
          %214 = sbr.rel (%p212) target = $region20
        $region19: #{tpu_custom_call.1} parent=11 // pred_region
          _
        $region20: #{tpu_custom_call.1} parent=11 // pred_fallthru
          _
        // Predicated region
        $region21: #{tpu_custom_call.1} parent=11 // pred_check
          %p215 = pneg %p137
        $region22: #{tpu_custom_call.1} parent=11 // pred_check_branch
          %217 = sbr.rel (%p215) target = $region24
        $region23: #{tpu_custom_call.1} parent=11 // pred_region
          %s219 = ssub.s32 1024, 1024
          %220 = vsyncadd [#allocation9], %s219
          %s221 = sshll.u32 [#allocation8], 4
          %s222 = int_to_ptr.vmem [resolvable:$true] %s221
          %227 = dma.hbm_to_vmem [thread:$0]  %s4, 1024, %s222, [#allocation9], 128, 128, 8
        $region24: #{tpu_custom_call.1} parent=11 // pred_fallthru
          _
        // Predicated region
        $region25: #{tpu_custom_call.1} parent=11 // pred_check
          %p228 = pneg %p158
        $region26: #{tpu_custom_call.1} parent=11 // pred_check_branch
          %230 = sbr.rel (%p228) target = $region28
        $region27: #{tpu_custom_call.1} parent=11 // pred_region
          _
        $region28: #{tpu_custom_call.1} parent=11 // pred_fallthru
          _
      $region12: #{tpu_custom_call.1} parent=5 // pred_fallthru
        _
      %p231 = scmp.lt.s32.totalorder %s22, 2
      // Predicated region
      $region29: #{tpu_custom_call.1} parent=5 // pred_check
        %p232 = pneg %p231
      $region30: #{tpu_custom_call.1} parent=5 // pred_check_branch
        %234 = sbr.rel (%p232) target = $region32
      $region31: #{tpu_custom_call.1} parent=5 // pred_region
        // Predicated region
        $region33: #{tpu_custom_call.1} parent=31 // pred_check
          %p235 = pneg %p42
        $region34: #{tpu_custom_call.1} parent=31 // pred_check_branch
          %237 = sbr.rel (%p235) target = $region36
        $region35: #{tpu_custom_call.1} parent=31 // pred_region
          %s238 = sand.u32 %s32, 1
          %s239 = scalar_lea.sflag [#allocation3], %s238
          %s240 = sand.u32 %s32, 1
          %s241 = smul.addr %s240, 8
          %s242 = scalar_lea.vmem [#allocation2], %s241
          %s244 = ssub.s32 128, 128
          %245 = vsyncadd %s239, %s244
          %s246 = smul.addr %s22, 128
          %s247 = scalar_lea.hbm %s0, %s246
          %s249 = sshll.u32 %s242, 4
          %s250 = int_to_ptr.vmem [resolvable:$true] %s249
          %252 = dma.hbm_to_vmem [thread:$0]  %s247, 128, %s250, %s239
        $region36: #{tpu_custom_call.1} parent=31 // pred_fallthru
          _
        // Predicated region
        $region37: #{tpu_custom_call.1} parent=31 // pred_check
          %p253 = pneg %p68
        $region38: #{tpu_custom_call.1} parent=31 // pred_check_branch
          %255 = sbr.rel (%p253) target = $region40
        $region39: #{tpu_custom_call.1} parent=31 // pred_region
          %s256 = sand.u32 %s22, 1
          %s257 = scalar_lea.sflag [#allocation6], %s256
          %s258 = sand.u32 %s58, 1
          %s259 = smul.addr %s258, 8
          %s260 = scalar_lea.vmem [#allocation5], %s259
          %s262 = ssub.s32 128, 128
          %263 = vsyncadd %s257, %s262
          %s264 = smul.addr %s22, 128
          %s265 = scalar_lea.hbm %s1, %s264
          %s267 = sshll.u32 %s260, 4
          %s268 = int_to_ptr.vmem [resolvable:$true] %s267
          %270 = dma.hbm_to_vmem [thread:$0]  %s265, 128, %s268, %s257
        $region40: #{tpu_custom_call.1} parent=31 // pred_fallthru
          _
      $region32: #{tpu_custom_call.1} parent=5 // pred_fallthru
        _
      %p271 = scmp.le.s32.totalorder 1, %s22
      %p272 = scmp.lt.s32.totalorder %s22, 3
      %p273 = pnand %p271, %p272
      %p274 = pneg %p273
      // Predicated region
      $region41: #{tpu_custom_call.1} parent=5 // pred_check
        _
      $region42: #{tpu_custom_call.1} parent=5 // pred_check_branch
        %276 = sbr.rel (%p273) target = $region44
      $region43: #{tpu_custom_call.1} parent=5 // pred_region
        %s277 = ssub.s32 %s22, 1
        %s278 = sand.u32 %s35, 1
        %s279 = scalar_lea.sflag [#allocation3], %s278
        %s280 = sand.u32 %s35, 1
        %s281 = smul.addr %s280, 8
        %s282 = scalar_lea.vmem [#allocation2], %s281
        // Predicated region
        $region45: #{tpu_custom_call.1} parent=43 // pred_check
          %p283 = pneg %p48
        $region46: #{tpu_custom_call.1} parent=43 // pred_check_branch
          %285 = sbr.rel (%p283) target = $region48
        $region47: #{tpu_custom_call.1} parent=43 // pred_region
          %286 = dma.done %s279, 128
        $region48: #{tpu_custom_call.1} parent=43 // pred_fallthru
          _
        %s287 = sand.u32 %s27, 1
        %s288 = scalar_lea.sflag [#allocation6], %s287
        %s289 = sand.u32 %s61, 1
        %s290 = smul.addr %s289, 8
        %s291 = scalar_lea.vmem [#allocation5], %s290
        // Predicated region
        $region49: #{tpu_custom_call.1} parent=43 // pred_check
          %p292 = pneg %p74
        $region50: #{tpu_custom_call.1} parent=43 // pred_check_branch
          %294 = sbr.rel (%p292) target = $region52
        $region51: #{tpu_custom_call.1} parent=43 // pred_region
          %295 = dma.done %s288, 128
        $region52: #{tpu_custom_call.1} parent=43 // pred_fallthru
          _
        // Predicated region
        $region53: #{tpu_custom_call.1} parent=43 // pred_check
          %p296 = pneg %p95
        $region54: #{tpu_custom_call.1} parent=43 // pred_check_branch
          %298 = sbr.rel (%p296) target = $region56
        $region55: #{tpu_custom_call.1} parent=43 // pred_region
          %299 = dma.done [#allocation6], 1024
        $region56: #{tpu_custom_call.1} parent=43 // pred_fallthru
          _
        // Predicated region
        $region57: #{tpu_custom_call.1} parent=43 // pred_check
          %p300 = pneg %p137
        $region58: #{tpu_custom_call.1} parent=43 // pred_check_branch
          %302 = sbr.rel (%p300) target = $region60
        $region59: #{tpu_custom_call.1} parent=43 // pred_region
          %303 = dma.done [#allocation9], 1024
        $region60: #{tpu_custom_call.1} parent=43 // pred_fallthru
          _
        %s304 = sand.u32 %s35, 1
        %s305 = scalar_lea.sflag [#allocation3], %s304
        %s306 = sand.u32 %s35, 1
        %s307 = smul.addr %s306, 8
        %s308 = scalar_lea.vmem [#allocation2], %s307
        %p309 = pneg %p48
        %p310 = pneg %p45
        %s311 = sand.u32 %s27, 1
        %s312 = scalar_lea.sflag [#allocation6], %s311
        %s313 = sand.u32 %s61, 1
        %s314 = smul.addr %s313, 8
        %s315 = scalar_lea.vmem [#allocation5], %s314
        %p316 = pneg %p74
        %p317 = pneg %p71
        %p318 = pneg %p95
        %p319 = pneg %p92
        %p320 = pneg %p116
        %p321 = pneg %p113
        %p322 = pneg %p137
        %p323 = pneg %p134
        %p324 = pneg %p158
        %p325 = pneg %p155
        %p326 = pneg %p184
        %p327 = pneg %p181
        %s328 = sand.u32 %s171, 1
        %s329 = scalar_lea.sflag [#allocation4], %s328
        %s330 = sand.u32 %s171, 1
        %s331 = smul.addr %s330, 8
        %s332 = scalar_lea.vmem [#allocation10], %s331
        %v333 = vld [vmem:[%s291] sm:$0xff]
        %v334 = vld [vmem:[#allocation7] sm:$0xff]
        %v335 = vld [vmem:[#allocation7 + $0x8] sm:$0xff]
        %v336 = vld [vmem:[#allocation7 + $0x10] sm:$0xff]
        %v337 = vld [vmem:[#allocation7 + $0x18] sm:$0xff]
        %v338 = vld [vmem:[#allocation7 + $0x20] sm:$0xff]
        %v339 = vld [vmem:[#allocation7 + $0x28] sm:$0xff]
        %v340 = vld [vmem:[#allocation7 + $0x30] sm:$0xff]
        %v341 = vld [vmem:[#allocation7 + $0x38] sm:$0xff]
        %v342 = vld [vmem:[%s3] sm:$0x1]
        %v344 = vlaneseq
        %v345 = vshrl.u32 %v344, 7
        %v346 = vsub.s32 0, %v345
        %v347 = vrot.slane %v342, %v346
        %vm349 = vcmask 523264
        %v351 = vsel %vm349, %v333, 0
        %353 = vmatprep.subr.mxu0 0.0
        %354 = vmatpush1.msra.mxu0 0.0
        %355 = vmatprep.subr.mxu0 0.0
        %356 = vmatpush1.msra.mxu0 0.0
        %357 = vmatprep.subr.mxu0 0.0
        %358 = vmatpush1.msra.mxu0 0.0
        %359 = vmatprep.subr.mxu0 0.0
        %360 = vmatpush1.msra.mxu0 0.0
        %361 = vmatprep.subr.mxu0 0.0
        %362 = vmatpush1.msra.mxu0 0.0
        %363 = vmatprep.subr.mxu0 0.0
        %364 = vmatpush1.msra.mxu0 0.0
        %365 = vmatprep.subr.mxu0 0.0
        %366 = vmatpush1.msra.mxu0 0.0
        %367 = vmatprep.subr.mxu0 0.0
        %368 = vmatpush1.msra.mxu0 0.0
        %369 = vmatprep.subr.mxu0 0.0
        %370 = vmatpush1.msra.mxu0 %v341
        %371 = vmatprep.subr.mxu0 0.0
        %372 = vmatpush1.msra.mxu0 %v340
        %373 = vmatprep.subr.mxu0 0.0
        %374 = vmatpush1.msra.mxu0 %v339
        %375 = vmatprep.subr.mxu0 0.0
        %376 = vmatpush1.msra.mxu0 %v338
        %377 = vmatprep.subr.mxu0 0.0
        %378 = vmatpush1.msra.mxu0 %v337
        %379 = vmatprep.subr.mxu0 0.0
        %380 = vmatpush1.msra.mxu0 %v336
        %381 = vmatprep.subr.mxu0 0.0
        %382 = vmatpush1.msra.mxu0 %v335
        %383 = vmatprep.subr.mxu0 0.0
        %384 = vmatpush1.msra.mxu0 %v334
        %385 = vmatprep.subr.mxu0 0.0
        %386 = vmatpush2.msra.mxu0 0.0
        %387 = vmatprep.subr.mxu0 0.0
        %388 = vmatpush2.msra.mxu0 0.0
        %389 = vmatprep.subr.mxu0 0.0
        %390 = vmatpush2.msra.mxu0 0.0
        %391 = vmatprep.subr.mxu0 0.0
        %392 = vmatpush2.msra.mxu0 0.0
        %393 = vmatprep.subr.mxu0 0.0
        %394 = vmatpush2.msra.mxu0 0.0
        %395 = vmatprep.subr.mxu0 0.0
        %396 = vmatpush2.msra.mxu0 0.0
        %397 = vmatprep.subr.mxu0 0.0
        %398 = vmatpush2.msra.mxu0 0.0
        %399 = vmatprep.subr.mxu0 0.0
        %400 = vmatpush2.msra.mxu0 0.0
        %401 = vmatprep.subr.mxu0 0.0
        %402 = vmatpush2.msra.mxu0 0.0
        %403 = vmatprep.subr.mxu0 0.0
        %404 = vmatpush2.msra.mxu0 0.0
        %405 = vmatprep.subr.mxu0 0.0
        %406 = vmatpush2.msra.mxu0 0.0
        %407 = vmatprep.subr.mxu0 0.0
        %408 = vmatpush2.msra.mxu0 0.0
        %409 = vmatprep.subr.mxu0 0.0
        %410 = vmatpush2.msra.mxu0 0.0
        %411 = vmatprep.subr.mxu0 0.0
        %412 = vmatpush2.msra.mxu0 0.0
        %413 = vmatprep.subr.mxu0 0.0
        %414 = vmatpush2.msra.mxu0 0.0
        %415 = vmatprep.subr.mxu0 0.0
        %416 = vmatpush2.msra.mxu0 0.0
        %417 = vmatprep.mubr.f32.mxu0 0.0
        %418 = vmatmul.mubr.f32.gmra.mxu0 %v351
        %v419 = vpop.f32.mrf.mxu0
        %v420 = vadd.f32 %v347, %v419
        %v421 = vpop.f32.mrf.mxu0
        %422 = vdwg.mxu0
        %v423 = vmax.f32 %v420, 0.0
        %v424 = vld [vmem:[#allocation8] sm:$0xff]
        %v425 = vld [vmem:[#allocation8 + $0x8] sm:$0xff]
        %v426 = vld [vmem:[#allocation8 + $0x10] sm:$0xff]
        %v427 = vld [vmem:[#allocation8 + $0x18] sm:$0xff]
        %v428 = vld [vmem:[#allocation8 + $0x20] sm:$0xff]
        %v429 = vld [vmem:[#allocation8 + $0x28] sm:$0xff]
        %v430 = vld [vmem:[#allocation8 + $0x30] sm:$0xff]
        %v431 = vld [vmem:[#allocation8 + $0x38] sm:$0xff]
        %v432 = vld [vmem:[%s5] sm:$0x1]
        %v434 = vlaneseq
        %v435 = vshrl.u32 %v434, 7
        %v436 = vsub.s32 0, %v435
        %v437 = vrot.slane %v432, %v436
        %v440 = vsel %vm349, %v423, 0
        %442 = vmatprep.subr.mxu0 0.0
        %443 = vmatpush1.msra.mxu0 0.0
        %444 = vmatprep.subr.mxu0 0.0
        %445 = vmatpush1.msra.mxu0 0.0
        %446 = vmatprep.subr.mxu0 0.0
        %447 = vmatpush1.msra.mxu0 0.0
        %448 = vmatprep.subr.mxu0 0.0
        %449 = vmatpush1.msra.mxu0 0.0
        %450 = vmatprep.subr.mxu0 0.0
        %451 = vmatpush1.msra.mxu0 0.0
        %452 = vmatprep.subr.mxu0 0.0
        %453 = vmatpush1.msra.mxu0 0.0
        %454 = vmatprep.subr.mxu0 0.0
        %455 = vmatpush1.msra.mxu0 0.0
        %456 = vmatprep.subr.mxu0 0.0
        %457 = vmatpush1.msra.mxu0 0.0
        %458 = vmatprep.subr.mxu0 0.0
        %459 = vmatpush1.msra.mxu0 %v431
        %460 = vmatprep.subr.mxu0 0.0
        %461 = vmatpush1.msra.mxu0 %v430
        %462 = vmatprep.subr.mxu0 0.0
        %463 = vmatpush1.msra.mxu0 %v429
        %464 = vmatprep.subr.mxu0 0.0
        %465 = vmatpush1.msra.mxu0 %v428
        %466 = vmatprep.subr.mxu0 0.0
        %467 = vmatpush1.msra.mxu0 %v427
        %468 = vmatprep.subr.mxu0 0.0
        %469 = vmatpush1.msra.mxu0 %v426
        %470 = vmatprep.subr.mxu0 0.0
        %471 = vmatpush1.msra.mxu0 %v425
        %472 = vmatprep.subr.mxu0 0.0
        %473 = vmatpush1.msra.mxu0 %v424
        %474 = vmatprep.subr.mxu0 0.0
        %475 = vmatpush2.msra.mxu0 0.0
        %476 = vmatprep.subr.mxu0 0.0
        %477 = vmatpush2.msra.mxu0 0.0
        %478 = vmatprep.subr.mxu0 0.0
        %479 = vmatpush2.msra.mxu0 0.0
        %480 = vmatprep.subr.mxu0 0.0
        %481 = vmatpush2.msra.mxu0 0.0
        %482 = vmatprep.subr.mxu0 0.0
        %483 = vmatpush2.msra.mxu0 0.0
        %484 = vmatprep.subr.mxu0 0.0
        %485 = vmatpush2.msra.mxu0 0.0
        %486 = vmatprep.subr.mxu0 0.0
        %487 = vmatpush2.msra.mxu0 0.0
        %488 = vmatprep.subr.mxu0 0.0
        %489 = vmatpush2.msra.mxu0 0.0
        %490 = vmatprep.subr.mxu0 0.0
        %491 = vmatpush2.msra.mxu0 0.0
        %492 = vmatprep.subr.mxu0 0.0
        %493 = vmatpush2.msra.mxu0 0.0
        %494 = vmatprep.subr.mxu0 0.0
        %495 = vmatpush2.msra.mxu0 0.0
        %496 = vmatprep.subr.mxu0 0.0
        %497 = vmatpush2.msra.mxu0 0.0
        %498 = vmatprep.subr.mxu0 0.0
        %499 = vmatpush2.msra.mxu0 0.0
        %500 = vmatprep.subr.mxu0 0.0
        %501 = vmatpush2.msra.mxu0 0.0
        %502 = vmatprep.subr.mxu0 0.0
        %503 = vmatpush2.msra.mxu0 0.0
        %504 = vmatprep.subr.mxu0 0.0
        %505 = vmatpush2.msra.mxu0 0.0
        %506 = vmatprep.mubr.f32.mxu0 0.0
        %507 = vmatmul.mubr.f32.gmra.mxu0 %v440
        %v508 = vpop.f32.mrf.mxu0
        %v509 = vadd.f32 %v437, %v508
        %v510 = vpop.f32.mrf.mxu0
        %511 = vdwg.mxu0
        %v512 = vld [vmem:[%s282] sm:$0xff]
        %v513 = vmax.f32 %v512, 0.0
        %514 = vst.msk [vmem:[%s332] sm:$0xff] %vm349, %v513
        %v515 = vmax.f32 %v509, 0.0
        %517 = vrot.lane.b32.xlu0 %v515, 64
        %v518 = vpop.permute.xlu0 %517
        %vm520 = vcmask 1048064
        %521 = vst.msk [vmem:[%s332] sm:$0xff] %vm520, %v518
        %s522 = sand.u32 %s171, 1
        %s523 = scalar_lea.sflag [#allocation4], %s522
        %s524 = sand.u32 %s171, 1
        %s525 = smul.addr %s524, 8
        %s526 = scalar_lea.vmem [#allocation10], %s525
        // Predicated region
        $region61: #{tpu_custom_call.1} parent=43 // pred_check
          %p527 = pneg %p181
        $region62: #{tpu_custom_call.1} parent=43 // pred_check_branch
          %529 = sbr.rel (%p527) target = $region64
        $region63: #{tpu_custom_call.1} parent=43 // pred_region
          %s531 = ssub.s32 128, 128
          %532 = vsyncadd %s523, %s531
          %s533 = smul.addr %s27, 128
          %s534 = scalar_lea.hbm %s6, %s533
          %s536 = sshll.u32 %s526, 4
          %s537 = int_to_ptr.vmem [resolvable:$true] %s536
          %539 = dma.vmem_to_hbm [thread:$0]  %s537, 128, %s534, %s523
        $region64: #{tpu_custom_call.1} parent=43 // pred_fallthru
          _
      $region44: #{tpu_custom_call.1} parent=5 // pred_fallthru
        _
      %p540 = scmp.le.s32.totalorder 2, %s22
      // Predicated region
      $region65: #{tpu_custom_call.1} parent=5 // pred_check
        %p541 = pneg %p540
      $region66: #{tpu_custom_call.1} parent=5 // pred_check_branch
        %543 = sbr.rel (%p541) target = $region68
      $region67: #{tpu_custom_call.1} parent=5 // pred_region
        %s544 = ssub.s32 %s22, 2
        // Predicated region
        $region69: #{tpu_custom_call.1} parent=67 // pred_check
          %p545 = pneg %p187
        $region70: #{tpu_custom_call.1} parent=67 // pred_check_branch
          %547 = sbr.rel (%p545) target = $region72
        $region71: #{tpu_custom_call.1} parent=67 // pred_region
          %s548 = sand.u32 %s172, 1
          %s549 = scalar_lea.sflag [#allocation4], %s548
          %s550 = sand.u32 %s172, 1
          %s551 = smul.addr %s550, 8
          %s552 = scalar_lea.vmem [#allocation10], %s551
          %553 = dma.done %s549, 128
        $region72: #{tpu_custom_call.1} parent=67 // pred_fallthru
          _
      $region68: #{tpu_custom_call.1} parent=5 // pred_fallthru
        _
    $region6: #{tpu_custom_call.1} parent=1 // loop_footer
      %s26 = sadd.s32 1, %s22
    $region7: #{tpu_custom_call.1} parent=1 // loop_footer_branch
      %21 = sbr.rel target = $region3
    $region8: #{tpu_custom_call.1} parent=1 // loop_exit
      _
    %554 = vsyncpa [#allocation3], 1
    %s555 = scalar_lea.sflag [#allocation3], 1
    %556 = vsyncpa %s555, 1
    %557 = vsyncpa [#allocation6], 1
    %s558 = scalar_lea.sflag [#allocation6], 1
    %559 = vsyncpa %s558, 1
    %560 = vsyncpa [#allocation9], 1
    %561 = vsyncpa [#allocation4], 1
    %s562 = scalar_lea.sflag [#allocation4], 1
    %563 = vsyncpa %s562, 1

</llo_original>
